<compile_context>
chip_gen: v5e
topology: v5e:2x2
jax: 0.10.0
libtpu: 0.0.40
codegen_flags: <defaults>
</compile_context>

<pallas_src>
import math

import jax
import jax.numpy as jnp
from jax import lax
from jax.experimental import pallas as pl
from jax.experimental.pallas import tpu as pltpu

LANE = 128
SUBLANE = 8
CHUNK = LANE * SUBLANE                    # 1024 elements = one (8,128) f32 vreg
TARGET_BLOCK_BYTES = 2 * 1024 * 1024      # per streamed input per pipeline buffer
MAX_SMEM_WEIGHT_ENTRIES = 1 << 17         # per-chunk weight table cap (<=512 KiB SMEM)


def _round_down_multiple(x, m):
    return max(m, (x // m) * m)


def _guess_num_tensorcores():
    """Best-effort TensorCores-per-device (v7x: 2, v5e/v6e: 1).

    The kernel is correct for any value >= 1; with the gated tail mask a
    2-way split costs at most one duplicated block on single-core chips.
    """
    try:
        info = pltpu.get_tpu_info()
        for name in ("num_cores", "core_count", "num_tensorcores",
                     "tensorcore_count", "num_tensor_cores"):
            v = getattr(info, name, None)
            if isinstance(v, int) and v > 0:
                return v
    except Exception:
        pass
    try:
        kind = (getattr(jax.devices()[0], "device_kind", "") or "").lower()
        if any(s in kind for s in ("v5e", "v5 lite", "v5litepod",
                                   "v6e", "v6 lite")):
            return 1
    except Exception:
        pass
    return 2


def _make_kernel(*, n_sub, steps_per_slice, num_full_blocks, tail_count,
                 mask_possible, w_mode, exclude_zeros, unroll):
    """w_mode in {"none", "stream", "chunk"}."""

    def kernel(*refs):
        it = iter(refs)
        x_ref = next(it)
        t_ref = next(it)
        w_ref = next(it) if w_mode in ("stream", "chunk") else None
        loss_ref = next(it)                       # (1, 8, 128) per-slice partial
        cnt_ref = next(it) if exclude_zeros else None

        i = pl.program_id(1)

        @pl.when(i == 0)
        def _():
            loss_ref[0] = jnp.zeros((SUBLANE, LANE), jnp.float32)
            if exclude_zeros:
                cnt_ref[0] = jnp.zeros((SUBLANE, LANE), jnp.float32)

        # Un-clamped global block id (duplicated trailing blocks keep their raw
        # id so they are fully masked out below).
        raw_b = pl.program_id(0) * steps_per_slice + i
        block_chunk0 = raw_b * n_sub              # global chunk id of chunk 0

        def make_body(masked, local_idx, thresh):
            def body(c, carry):
                if exclude_zeros:
                    acc, cnt = carry
                else:
                    acc = carry
                r0 = pl.multiple_of(c * SUBLANE, SUBLANE)
                xs = x_ref[pl.ds(r0, SUBLANE), :].astype(jnp.float32)
                ts = t_ref[pl.ds(r0, SUBLANE), :].astype(jnp.float32)
                d = xs - ts
                l = d * d
                if w_mode == "stream":
                    l = l * w_ref[pl.ds(r0, SUBLANE), :].astype(jnp.float32)
                elif w_mode == "chunk":
                    # One f32 scalar per 1024-element chunk, read from SMEM.
                    l = l * w_ref[block_chunk0 + c]
                valid = None
                if masked:
                    # Local (within-chunk) index compare: values stay < 1024,
                    # so this never overflows int32 regardless of tensor size.
                    valid = local_idx < (thresh - c * CHUNK)
                    l = jnp.where(valid, l, 0.0)
                acc = acc + l
                if exclude_zeros:
                    nz = ts != 0.0
                    if masked:
                        nz = jnp.logical_and(nz, valid)
                    cnt = cnt + nz.astype(jnp.float32)
                    return acc, cnt
                return acc
            return body

        def accumulate(masked):
            if masked:
                row = lax.broadcasted_iota(jnp.int32, (SUBLANE, LANE), 0)
                col = lax.broadcasted_iota(jnp.int32, (SUBLANE, LANE), 1)
                local_idx = row * LANE + col           # 0..1023 within a chunk
                # Only the single real partial block keeps `tail_count` valid
                # elements; clamped duplicate blocks contribute nothing.
                thresh = jnp.where(raw_b == num_full_blocks,
                                   jnp.int32(tail_count), jnp.int32(0))
            else:
                local_idx = None
                thresh = None
            zeros = jnp.zeros((SUBLANE, LANE), jnp.float32)
            init = (zeros, zeros) if exclude_zeros else zeros
            out = lax.fori_loop(0, n_sub, make_body(masked, local_idx, thresh),
                                init, unroll=unroll)
            if exclude_zeros:
                acc, cnt = out
                loss_ref[0] += acc
                cnt_ref[0] += cnt
            else:
                loss_ref[0] += out

        if mask_possible:
            is_edge = raw_b >= num_full_blocks
            # Full blocks take the maskless path: zero extra VALU work.
            @pl.when(jnp.logical_not(is_edge))
            def _():
                accumulate(False)

            @pl.when(is_edge)
            def _():
                accumulate(True)
        else:
            accumulate(False)

    return kernel


def wmse(inputs, targets, weights=None, exclude_zeros=False):
    assert inputs.shape == targets.shape
    n_valid = int(math.prod(inputs.shape)) if inputs.ndim else 1
    assert n_valid > 0
    # NOTE: exclude_zeros with an all-zero `targets` divides by zero (matches
    # the PyTorch reference).  The nonzero count is accumulated in f32 per
    # (sublane, lane) slot: exact until a slot exceeds 2**24 (~17B elements
    # total), fine for practical workloads.

    # ---- classify the weight broadcast pattern ------------------------------
    w_mode = "none"
    w_scalar = None
    w_stream = None
    w_chunks = None
    if weights is not None:
        w = jnp.asarray(weights)
        assert w.ndim <= inputs.ndim, "weights must be broadcastable to inputs"
        if w.size == 1:
            w_mode = "scalar"
            w_scalar = w.reshape(()).astype(jnp.float32)
        else:
            wshape = (1,) * (inputs.ndim - w.ndim) + tuple(w.shape)
            for wd, xd in zip(wshape, inputs.shape):
                if wd not in (1, xd):
                    raise ValueError("weights not broadcastable to inputs")
            last = max(d for d, wd in enumerate(wshape) if wd != 1)
            period = int(math.prod(inputs.shape[last + 1:]))  # trailing run
            n_chunks = n_valid // CHUNK
            if period % CHUNK == 0 and n_chunks <= MAX_SMEM_WEIGHT_ENTRIES:
                # One f32 per 1024-element chunk, read from SMEM in-kernel.
                w_mode = "chunk"
                lead_shape = inputs.shape[: last + 1]
                w_lead = jnp.broadcast_to(
                    w.reshape(wshape[: last + 1]), lead_shape
                ).reshape(-1).astype(jnp.float32)
                w_chunks = jnp.repeat(w_lead, period // CHUNK)
            else:
                # TODO(synk): compress per-row/per-chunk weights for the fully
                # general case (blocked SMEM or a narrow VMEM side-stream)
                # instead of materializing and streaming the full broadcast.
                w_mode = "stream"
                w_stream = jnp.broadcast_to(w.reshape(wshape), inputs.shape)

    # ---- lane-dense slabs ----------------------------------------------------
    def to_slab(a):
        flat = a.reshape(-1)
        rem = flat.shape[0] % CHUNK
        if rem:
            # Rare path (element count not a multiple of 1024) pays a pad copy.
            # TODO(synk): head/tail split to avoid the copy for huge odd sizes.
            flat = jnp.concatenate([flat, jnp.zeros((CHUNK - rem,), flat.dtype)])
        return flat.reshape(-1, LANE)

    x = to_slab(inputs)
    t = to_slab(targets)
    stream_args = [x, t]
    if w_mode == "stream":
        stream_args.append(to_slab(w_stream))

    rows = x.shape[0]                              # multiple of SUBLANE
    itemsize = max(int(a.dtype.itemsize) for a in stream_args)
    block_rows = min(
        rows,
        _round_down_multiple(TARGET_BLOCK_BYTES // (LANE * itemsize), SUBLANE))
    block_elems = block_rows * LANE
    n_sub = block_rows // SUBLANE
    unroll = 8 if n_sub % 8 == 0 else (4 if n_sub % 4 == 0 else
                                       (2 if n_sub % 2 == 0 else 1))

    steps_total = pl.cdiv(rows, block_rows)
    num_tc = _guess_num_tensorcores()
    num_slices = num_tc if steps_total >= num_tc else 1
    steps_per_slice = pl.cdiv(steps_total, num_slices)
    clamp = num_slices * steps_per_slice != steps_total

    num_full_blocks = n_valid // block_elems
    tail_count = n_valid % block_elems
    mask_possible = (tail_count != 0) or clamp

    def in_index(c, i):
        b = c * steps_per_slice + i
        if clamp:
            # Duplicated trailing blocks stay in bounds; their contribution is
            # zeroed by the gated in-kernel mask.
            b = jnp.minimum(b, steps_total - 1)
        return (b, 0)

    data_spec = pl.BlockSpec((block_rows, LANE), in_index)
    in_specs = [data_spec, data_spec]
    call_args = list(stream_args)
    if w_mode == "stream":
        in_specs.append(data_spec)                 # (already in call_args)
    elif w_mode == "chunk":
        # Pad the per-chunk table so every (possibly duplicated / partial)
        # block's chunk ids are in range, then keep the whole table in SMEM.
        total_chunk_slots = num_slices * steps_per_slice * n_sub
        pad = total_chunk_slots - w_chunks.shape[0]
        if pad > 0:
            w_chunks = jnp.concatenate(
                [w_chunks, jnp.zeros((pad,), jnp.float32)])
        in_specs.append(pl.BlockSpec(memory_space=pltpu.MemorySpace.SMEM))
        call_args.append(w_chunks)

    out_spec = pl.BlockSpec((1, SUBLANE, LANE), lambda c, i: (c, 0, 0))
    partial = jax.ShapeDtypeStruct((num_slices, SUBLANE, LANE), jnp.float32)
    if exclude_zeros:
        out_shape = (partial, partial)
        out_specs = (out_spec, out_spec)
    else:
        out_shape = partial
        out_specs = out_spec

    kernel = _make_kernel(
        n_sub=n_sub,
        steps_per_slice=steps_per_slice,
        num_full_blocks=num_full_blocks,
        tail_count=tail_count,
        mask_possible=mask_possible,
        w_mode=w_mode if w_mode in ("stream", "chunk") else "none",
        exclude_zeros=exclude_zeros,
        unroll=unroll)

    bytes_accessed = sum(int(a.nbytes) for a in call_args)
    bytes_accessed += (2 if exclude_zeros else 1) * num_slices * SUBLANE * LANE * 4
    flops = n_valid * (4 if w_mode in ("stream", "chunk") else 3)
    cost = pl.CostEstimate(flops=flops, transcendentals=0,
                           bytes_accessed=bytes_accessed)

    outs = pl.pallas_call(
        kernel,
        out_shape=out_shape,
        grid_spec=pltpu.PrefetchScalarGridSpec(
            num_scalar_prefetch=0,
            grid=(num_slices, steps_per_slice),
            in_specs=in_specs,
            out_specs=out_specs,
        ),
        compiler_params=pltpu.CompilerParams(
            dimension_semantics=("parallel", "arbitrary"),
            # <= 32 MiB is safe on every generation (v5e default is only 16 MiB)
            # and leaves ample headroom over the ~4-12 MiB working set here.
            vmem_limit_bytes=32 * 1024 * 1024),
        cost_estimate=cost,
    )(*call_args)

    if exclude_zeros:
        loss_partials, cnt_partials = outs
        denom = jnp.sum(cnt_partials)
    else:
        loss_partials = outs
        denom = jnp.float32(n_valid)
    # Single tiny cross-lane reduction (num_slices * 8 * 128 elements).
    total = jnp.sum(loss_partials)
    if w_mode == "scalar":
        total = total * w_scalar       # scalar weights never touch the kernel
    return total / denom


if __name__ == "__main__":
    key = jax.random.PRNGKey(0)
    k1, k2, k3, k4, k5 = jax.random.split(key, 5)

    shape = (2, 4, 16, 16)  # NCHW
    x = jax.random.normal(k1, shape, jnp.float32)
    t = jax.random.normal(k2, shape, jnp.float32)

    # Default path: plain mean squared error.
    out = jax.block_until_ready(wmse(x, t))
    ref = jnp.mean((x - t) ** 2)
    assert jnp.allclose(out, ref, rtol=1e-5, atol=1e-6), (out, ref)

    # Scalar weight: folded outside the kernel (no weight stream at all).
    w_s = jnp.float32(0.37)
    out_s = jax.block_until_ready(wmse(x, t, weights=w_s))
    ref_s = jnp.mean((x - t) ** 2 * w_s)
    assert jnp.allclose(out_s, ref_s, rtol=1e-5, atol=1e-6), (out_s, ref_s)

    # Per-channel weight, compressed SMEM path (H*W a multiple of 1024).
    shape_c = (2, 4, 32, 32)
    xc = jax.random.normal(k3, shape_c, jnp.float32)
    tc = jax.random.normal(k4, shape_c, jnp.float32)
    w_c = jax.random.uniform(k5, (1, shape_c[1], 1, 1), jnp.float32) + 0.1
    out_c = jax.block_until_ready(wmse(xc, tc, weights=w_c))
    ref_c = jnp.mean((xc - tc) ** 2 * jnp.broadcast_to(w_c, shape_c))
    assert jnp.allclose(out_c, ref_c, rtol=1e-5, atol=1e-6), (out_c, ref_c)

    # Fully general weights: streamed-broadcast fallback path.
    w_g = jax.random.uniform(k5, (1, 1, 16, 16), jnp.float32)
    out_g = jax.block_until_ready(wmse(x, t, weights=w_g))
    ref_g = jnp.mean((x - t) ** 2 * jnp.broadcast_to(w_g, shape))
    assert jnp.allclose(out_g, ref_g, rtol=1e-5, atol=1e-6), (out_g, ref_g)

    # exclude_zeros path: sum(loss) / count_nonzero(targets).
    zmask = jax.random.bernoulli(k3, 0.7, shape)
    tz = jnp.where(zmask, t, 0.0)
    out_z = jax.block_until_ready(wmse(x, tz, exclude_zeros=True))
    ref_z = jnp.sum((x - tz) ** 2) / jnp.count_nonzero(tz)
    assert jnp.allclose(out_z, ref_z, rtol=1e-5, atol=1e-6), (out_z, ref_z)

    # Odd-sized tensor: exercises the gated tail mask (+ small pad path).
    shape_o = (2, 3, 7, 5)
    a = jax.random.normal(k4, shape_o, jnp.float32)
    b = jax.random.normal(k5, shape_o, jnp.float32)
    out_o = jax.block_until_ready(wmse(a, b))
    ref_o = jnp.mean((a - b) ** 2)
    assert jnp.allclose(out_o, ref_o, rtol=1e-5, atol=1e-6), (out_o, ref_o)

    print("KERNEL_OK")
</pallas_src>

<mosaic_0001>
module attributes {stable_mosaic.version = 11 : i64} {
  func.func @kernel(%arg0: i32, %arg1: i32, %arg2: memref<16x128xf32, #tpu.memory_space<vmem>>, %arg3: memref<16x128xf32, #tpu.memory_space<vmem>>, %arg4: memref<1x8x128xf32, #tpu.memory_space<vmem>>) attributes {dimension_semantics = [#tpu.dimension_semantics<parallel>, #tpu.dimension_semantics<arbitrary>], iteration_bounds = array<i64: 1, 1>, scalar_prefetch = 0 : i64, scratch_operands = 0 : i64, tpu.core_type = #tpu.core_type<tc>, window_params = [{transform_indices = @transform_0, window_bounds = array<i64: 16, 128>}, {transform_indices = @transform_1, window_bounds = array<i64: 16, 128>}, {transform_indices = @transform_2, window_bounds = array<i64: 1, 8, 128>}]} {
    %c0_i32 = arith.constant 0 : i32
    %0 = arith.cmpi eq, %arg1, %c0_i32 : i32
    %1 = arith.extui %0 : i1 to i32
    %c0_i32_0 = arith.constant 0 : i32
    %2 = arith.cmpi ne, %1, %c0_i32_0 : i32
    scf.if %2 {
      %cst_12 = arith.constant 0.000000e+00 : f32
      %28 = vector.broadcast %cst_12 : f32 to vector<8x128xf32>
      %c0_13 = arith.constant 0 : index
      %c0_14 = arith.constant 0 : index
      %c0_15 = arith.constant 0 : index
      %29 = vector.load %arg4[%c0_13, %c0_14, %c0_15] : memref<1x8x128xf32, #tpu.memory_space<vmem>>, vector<1x8x128xf32>
      %30 = vector.shape_cast %29 : vector<1x8x128xf32> to vector<8x128xf32>
      %31 = vector.shape_cast %28 : vector<8x128xf32> to vector<1x8x128xf32>
      tpu.vector_store %arg4[%c0_13, %c0_14, %c0_15], %31 {strides = array<i32>} : memref<1x8x128xf32, #tpu.memory_space<vmem>>, vector<1x8x128xf32>,
    } else {
    }
    %cst = arith.constant 0.000000e+00 : f32
    %3 = vector.broadcast %cst : f32 to vector<8x128xf32>
    %c0_i32_1 = arith.constant 0 : i32
    %c8_i32 = arith.constant 8 : i32
    %4 = arith.muli %c0_i32_1, %c8_i32 : i32
    %5 = tpu.assume_multiple %4, 8 : i32
    %6 = arith.index_cast %5 : i32 to index
    %c0 = arith.constant 0 : index
    %7 = vector.load %arg2[%6, %c0] : memref<16x128xf32, #tpu.memory_space<vmem>>, vector<8x128xf32>
    %8 = arith.index_cast %5 : i32 to index
    %c0_2 = arith.constant 0 : index
    %9 = vector.load %arg3[%8, %c0_2] : memref<16x128xf32, #tpu.memory_space<vmem>>, vector<8x128xf32>
    %10 = arith.subf %7, %9 : vector<8x128xf32>
    %11 = arith.mulf %10, %10 : vector<8x128xf32>
    %12 = arith.addf %3, %11 : vector<8x128xf32>
    %c1_i32 = arith.constant 1 : i32
    %c8_i32_3 = arith.constant 8 : i32
    %13 = arith.muli %c1_i32, %c8_i32_3 : i32
    %14 = tpu.assume_multiple %13, 8 : i32
    %15 = arith.index_cast %14 : i32 to index
    %c0_4 = arith.constant 0 : index
    %16 = vector.load %arg2[%15, %c0_4] : memref<16x128xf32, #tpu.memory_space<vmem>>, vector<8x128xf32>
    %17 = arith.index_cast %14 : i32 to index
    %c0_5 = arith.constant 0 : index
    %18 = vector.load %arg3[%17, %c0_5] : memref<16x128xf32, #tpu.memory_space<vmem>>, vector<8x128xf32>
    %19 = arith.subf %16, %18 : vector<8x128xf32>
    %20 = arith.mulf %19, %19 : vector<8x128xf32>
    %21 = arith.addf %12, %20 : vector<8x128xf32>
    %c2_i32 = arith.constant 2 : i32
    %c0_6 = arith.constant 0 : index
    %c0_7 = arith.constant 0 : index
    %c0_8 = arith.constant 0 : index
    %22 = vector.load %arg4[%c0_6, %c0_7, %c0_8] : memref<1x8x128xf32, #tpu.memory_space<vmem>>, vector<1x8x128xf32>
    %23 = vector.shape_cast %22 : vector<1x8x128xf32> to vector<8x128xf32>
    %24 = arith.addf %23, %21 : vector<8x128xf32>
    %c0_9 = arith.constant 0 : index
    %c0_10 = arith.constant 0 : index
    %c0_11 = arith.constant 0 : index
    %25 = vector.load %arg4[%c0_9, %c0_10, %c0_11] : memref<1x8x128xf32, #tpu.memory_space<vmem>>, vector<1x8x128xf32>
    %26 = vector.shape_cast %25 : vector<1x8x128xf32> to vector<8x128xf32>
    %27 = vector.shape_cast %24 : vector<8x128xf32> to vector<1x8x128xf32>
    tpu.vector_store %arg4[%c0_9, %c0_10, %c0_11], %27 {strides = array<i32>} : memref<1x8x128xf32, #tpu.memory_space<vmem>>, vector<1x8x128xf32>,
    return
  }
  func.func @transform_0(%arg0: i32, %arg1: i32) -> (i32, i32) {
    %c1_i32 = arith.constant 1 : i32
    %0 = arith.muli %arg0, %c1_i32 : i32
    %1 = arith.addi %0, %arg1 : i32
    %c0_i32 = arith.constant 0 : i32
    %c0_i32_0 = arith.constant 0 : i32
    return %1, %c0_i32 : i32, i32
  }
  func.func @transform_1(%arg0: i32, %arg1: i32) -> (i32, i32) {
    %c1_i32 = arith.constant 1 : i32
    %0 = arith.muli %arg0, %c1_i32 : i32
    %1 = arith.addi %0, %arg1 : i32
    %c0_i32 = arith.constant 0 : i32
    %c0_i32_0 = arith.constant 0 : i32
    return %1, %c0_i32 : i32, i32
  }
  func.func @transform_2(%arg0: i32, %arg1: i32) -> (i32, i32, i32) {
    %c0_i32 = arith.constant 0 : i32
    %c0_i32_0 = arith.constant 0 : i32
    %c0_i32_1 = arith.constant 0 : i32
    return %arg0, %c0_i32, %c0_i32_0 : i32, i32, i32
  }
}

</mosaic_0001>

<llo_original>
// kernel: tpu_custom_call.1
$region0: #{tpu_custom_call.1}
  #allocation0 [shape = 'u32[]', space=smem, size = 0x4, offset = 0x4, fixed_abs, tag = 'smem constant byte address 0x4 - core index']
  #allocation1 [shape = 'u32[72,128]{1,0:T(1,128)}', space=vmem, size = 0x9000, scoped, tag = 'internal scratch']
  %s0 = inlined_call_operand.hbm [shape: f32[16,128], index: 0, kind: input, shape index: {}]
  %s1 = inlined_call_operand.hbm [shape: f32[16,128], index: 1, kind: input, shape index: {}]
  %s2 = inlined_call_operand.hbm [shape: f32[1,8,128], index: 2, kind: output, shape index: {}]
  %s3 = sld [smem:[#allocation0]]
  $region30: #{tpu_custom_call.1} parent=0
    _
  %s5 = ssub.s32 1, %s3
  %s6 = scalar_select 0, %s5, %s3
  $region1: #{tpu_custom_call.1} parent=0
    #allocation2 [shape = 'u8[8192]{0}', space=vmem, size = 0x2000, scoped, tag = 'input window, operand 0, single buffered']
    #allocation3 [shape = 's32[1]{0}', space=sflag, size = 0x4, scoped, tag = 'scoped memory for tpu_custom_call.1']
    #allocation4 [shape = 's32[1]{0}', space=sflag, size = 0x4, scoped, tag = 'scoped memory for tpu_custom_call.1']
    #allocation5 [shape = 'u8[8192]{0}', space=vmem, size = 0x2000, scoped, tag = 'input window, operand 1, single buffered']
    #allocation6 [shape = 's32[1]{0}', space=sflag, size = 0x4, scoped, tag = 'scoped memory for tpu_custom_call.1']
    #allocation7 [shape = 'u8[4096]{0}', space=vmem, size = 0x1000, scoped, tag = 'output window, operand 0, single buffered']
    %7 = vsyncpa [#allocation3], 0
    %8 = vsyncpa [#allocation6], 0
    %9 = vsyncpa [#allocation4], 0
    // Predicated region
    $region2: #{tpu_custom_call.1} parent=1 // pred_check
      _
    $region3: #{tpu_custom_call.1} parent=1 // pred_check_branch
      %11 = sbr.rel (0) target = $region5
    $region4: #{tpu_custom_call.1} parent=1 // pred_region
      %s12 = sadd.s32 0, 0
      %s13 = smul.u32 2, %s12
      %15 = vsyncadd [#allocation3], 0
      %s16 = smul.addr %s13, 8
      %s17 = scalar_lea.hbm %s0, %s16
      %s18 = sshll.u32 %s17, 4
      %s19 = int_to_ptr.hbm [resolvable:$true] %s18
      %s20 = sshll.u32 [#allocation2], 4
      %s21 = int_to_ptr.vmem [resolvable:$true] %s20
      %26 = dma.hbm_to_vmem [thread:$0]  %s19, 256, %s21, [#allocation3], 128, 128, 8
    $region5: #{tpu_custom_call.1} parent=1 // pred_fallthru
      _
    // Predicated region
    $region6: #{tpu_custom_call.1} parent=1 // pred_check
      _
    $region7: #{tpu_custom_call.1} parent=1 // pred_check_branch
      %28 = sbr.rel (0) target = $region9
    $region8: #{tpu_custom_call.1} parent=1 // pred_region
      %s29 = sadd.s32 0, 0
      %s30 = smul.u32 2, %s29
      %32 = vsyncadd [#allocation6], 0
      %s33 = smul.addr %s30, 8
      %s34 = scalar_lea.hbm %s1, %s33
      %s35 = sshll.u32 %s34, 4
      %s36 = int_to_ptr.hbm [resolvable:$true] %s35
      %s37 = sshll.u32 [#allocation5], 4
      %s38 = int_to_ptr.vmem [resolvable:$true] %s37
      %43 = dma.hbm_to_vmem [thread:$0]  %s36, 256, %s38, [#allocation6], 128, 128, 8
    $region9: #{tpu_custom_call.1} parent=1 // pred_fallthru
      _
    // Predicated region
    $region10: #{tpu_custom_call.1} parent=1 // pred_check
      _
    $region11: #{tpu_custom_call.1} parent=1 // pred_check_branch
      %45 = sbr.rel (0) target = $region13
    $region12: #{tpu_custom_call.1} parent=1 // pred_region
      %47 = dma.done [#allocation3], 256
    $region13: #{tpu_custom_call.1} parent=1 // pred_fallthru
      _
    // Predicated region
    $region14: #{tpu_custom_call.1} parent=1 // pred_check
      _
    $region15: #{tpu_custom_call.1} parent=1 // pred_check_branch
      %49 = sbr.rel (0) target = $region17
    $region16: #{tpu_custom_call.1} parent=1 // pred_region
      %51 = dma.done [#allocation6], 256
    $region17: #{tpu_custom_call.1} parent=1 // pred_fallthru
      _
    %s52 = sadd.s32 0, 0
    %s53 = smul.u32 2, %s52
    %s54 = sadd.s32 0, 0
    %s55 = smul.u32 2, %s54
    %p56 = scmp.eq.s32.totalorder 0, 0
    // Predicated region
    $region18: #{tpu_custom_call.1} parent=1 // pred_check
      %p57 = pneg %p56
    $region19: #{tpu_custom_call.1} parent=1 // pred_check_branch
      %59 = sbr.rel (%p57) target = $region21
    $region20: #{tpu_custom_call.1} parent=1 // pred_region
      %60 = vst [vmem:[#allocation7] sm:$0xff] 0.0
    $region21: #{tpu_custom_call.1} parent=1 // pred_fallthru
      _
    %v61 = vld [vmem:[#allocation2] sm:$0xff]
    %v62 = vld [vmem:[#allocation5] sm:$0xff]
    %v63 = vsub.f32 %v61, %v62
    %v64 = vmul.f32 %v63, %v63
    %v65 = vadd.f32 %v64, 0.0
    %s66 = scalar_lea.vmem [#allocation2], 8
    %v67 = vld [vmem:[%s66] sm:$0xff]
    %s68 = scalar_lea.vmem [#allocation5], 8
    %v69 = vld [vmem:[%s68] sm:$0xff]
    %v70 = vsub.f32 %v67, %v69
    %v71 = vmul.f32 %v70, %v70
    %v72 = vadd.f32 %v65, %v71
    %v73 = vld [vmem:[#allocation7] sm:$0xff]
    %v74 = vadd.f32 %v73, %v72
    %75 = vst [vmem:[#allocation7] sm:$0xff] %v74
    // Predicated region
    $region22: #{tpu_custom_call.1} parent=1 // pred_check
      _
    $region23: #{tpu_custom_call.1} parent=1 // pred_check_branch
      %77 = sbr.rel (0) target = $region25
    $region24: #{tpu_custom_call.1} parent=1 // pred_region
      %79 = vsyncadd [#allocation4], 0
      %s81 = sshll.u32 [#allocation7], 4
      %s82 = int_to_ptr.vmem [resolvable:$true] %s81
      %s83 = sshll.u32 %s2, 4
      %s84 = int_to_ptr.hbm [resolvable:$true] %s83
      %86 = dma.vmem_to_hbm [thread:$0]  %s82, 128, %s84, [#allocation4]
    $region25: #{tpu_custom_call.1} parent=1 // pred_fallthru
      _
    // Predicated region
    $region26: #{tpu_custom_call.1} parent=1 // pred_check
      _
    $region27: #{tpu_custom_call.1} parent=1 // pred_check_branch
      %88 = sbr.rel (0) target = $region29
    $region28: #{tpu_custom_call.1} parent=1 // pred_region
      %90 = dma.done [#allocation4], 128
    $region29: #{tpu_custom_call.1} parent=1 // pred_fallthru
      _
    %91 = vsyncpa [#allocation3], 1
    %92 = vsyncpa [#allocation6], 1
    %93 = vsyncpa [#allocation4], 1

</llo_original>
